<compile_context>
chip_gen: v7x
topology: tpu7x:2x2x1
jax: 0.10.0
libtpu: 0.0.40
codegen_flags: <defaults>
</compile_context>

<pallas_src>
import functools

import jax
import jax.numpy as jnp
from jax import lax
from jax.experimental import pallas as pl
from jax.experimental.pallas import tpu as pltpu

_SQRT1_2 = 0.7071067811865476


def _gelu_exact(x):
    # PyTorch nn.GELU() default is the exact erf-based GELU (computed here in f32).
    return 0.5 * x * (1.0 + lax.erf(x * _SQRT1_2))


def _round_up(n, m):
    return ((n + m - 1) // m) * m


def _pad2d(a, rows, cols):
    r, c = a.shape
    if r == rows and c == cols:
        return a
    return jnp.pad(a, ((0, rows - r), (0, cols - c)))


def _sublane(itemsize):
    return {1: 32, 2: 16, 4: 8}.get(itemsize, 8)


@functools.lru_cache(maxsize=1)
def _chip_config():
    """Returns (tm_target, th_target, vmem_limit_bytes, num_tensorcores) for local chip."""
    kind = ""
    try:
        kind = jax.devices()[0].device_kind.lower()
    except Exception:
        pass
    vmem_cap = None
    try:
        vmem_cap = int(pltpu.get_tpu_info().vmem_capacity_bytes)
    except Exception:
        vmem_cap = None

    mib = 1024 * 1024
    if "v7" in kind or "7x" in kind:
        # 64 MiB VMEM, 3.2 TB/s HBM (roofline ~311 FLOP/byte), 2 TensorCores/chip.
        tm, th, cap, ntc = 384, 1024, 64 * mib, 2
    elif "v6" in kind:
        # 128 MiB VMEM, needs ~650 FLOP/weight-byte to be compute-bound -> big row tile.
        tm, th, cap, ntc = 768, 2048, 128 * mib, 1
    elif "v5" in kind and ("lite" in kind or "v5e" in kind):
        # v5e: tm=256 already clears 0.82 TB/s roofline; spend VMEM on th instead.
        tm, th, cap, ntc = 256, 2048, 128 * mib, 1
    elif "v5" in kind or "v4" in kind:
        # v4 / v5p megacore: 2 TCs share the work on the "parallel" axis.
        tm, th, cap, ntc = 512, 1024, 128 * mib, 2
    else:
        tm, th, cap, ntc = 256, 1024, 64 * mib, 1
    if vmem_cap is not None:
        cap = vmem_cap
    # Leave headroom for Mosaic internal scratch / other live buffers.
    return tm, th, (cap * 3) // 4, ntc


def _pick_th(H_p, th_target):
    """Largest multiple of 128 <= th_target that divides the 128-padded hidden dim."""
    th_target = max(128, min(th_target, H_p))
    th_target -= th_target % 128
    for cand in range(th_target, 127, -128):
        if H_p % cand == 0:
            return cand
    return 128


def _vmem_estimate(tm, th, C_p, O_p, in_bytes, out_bytes):
    # Double-buffered input blocks (x row tile, w1/b1 H-slice, w2 H-slice, b2),
    # double-buffered output tile, plus the f32 accumulator scratch.
    return (2 * (tm * C_p + C_p * th + th + th * O_p + O_p) * in_bytes
            + 2 * tm * O_p * out_bytes
            + 4 * tm * O_p)


def mlp_kernel(x_ref, w1_ref, b1_ref, w2_ref, b2_ref, o_ref, acc_ref):
    # x_ref:  (tm, C)   w1_ref: (C, th)   b1_ref: (1, th)
    # w2_ref: (th, O)   b2_ref: (1, O)    o_ref:  (tm, O)   acc_ref: (tm, O) f32
    h_idx = pl.program_id(1)

    # fc1 slice: native-dtype operands, f32 accumulation on the MXU.
    h = jnp.dot(x_ref[...], w1_ref[...], preferred_element_type=jnp.float32)
    h = _gelu_exact(h + b1_ref[...].astype(jnp.float32))
    # dropout(p=0.0) -> identity

    # fc2 partial product for this H slice (f32).
    partial = jnp.dot(h.astype(x_ref.dtype), w2_ref[...],
                      preferred_element_type=jnp.float32)

    @pl.when(h_idx == 0)
    def _():
        acc_ref[...] = partial          # direct write: no zero-fill + RMW on step 0

    @pl.when(h_idx != 0)
    def _():
        acc_ref[...] += partial

    @pl.when(h_idx == pl.num_programs(1) - 1)
    def _():
        y = acc_ref[...] + b2_ref[...].astype(jnp.float32)
        # dropout(p=0.0) -> identity
        o_ref[...] = y.astype(o_ref.dtype)


@functools.partial(jax.jit,
                   static_argnames=("tm", "th", "compute_dtype", "vmem_limit_bytes"))
def mlp_block(x, w1, b1, w2, b2, *, tm=None, th=None, compute_dtype=None,
              vmem_limit_bytes=None):
    """x: [B, S, C] -> [B, S, O].  Weights stored [in, out]; biases [1, out] or [out].

    compute_dtype: optional (e.g. jnp.bfloat16) to cast matmul operands for full MXU
    rate on v6e/v7x; accumulation stays f32, output keeps x.dtype.
    """
    B, S, C = x.shape
    H = w1.shape[1]
    O = w2.shape[1]
    M = B * S

    in_dtype = jnp.dtype(compute_dtype) if compute_dtype is not None else jnp.dtype(x.dtype)
    out_dtype = jnp.dtype(x.dtype)
    in_bytes = in_dtype.itemsize
    out_bytes = out_dtype.itemsize

    tm_t, th_t, vmem_default, num_tc = _chip_config()
    tm_target = tm if tm is not None else tm_t
    th_target = th if th is not None else th_t
    vmem_limit = vmem_limit_bytes if vmem_limit_bytes is not None else vmem_default

    # Lane-dense padding: all matmul/output dims become multiples of 128.
    C_p = _round_up(C, 128)
    H_p = _round_up(H, 128)
    O_p = _round_up(O, 128)

    # Row tile: respect the dtype's minimum sublane multiple (8 f32 / 16 bf16 / 32 i8).
    sub = max(_sublane(in_bytes), _sublane(out_bytes))
    M_r = _round_up(M, sub)
    tm_eff = _round_up(min(tm_target, M_r), sub)
    # Multi-TensorCore chips (v7x / megacore): guarantee >=2 row tiles when that still
    # leaves a reasonably large tile, so both cores get work on the "parallel" axis.
    if num_tc > 1 and M_r <= tm_eff and M_r // 2 >= 128:
        tm_eff = _round_up((M_r + 1) // 2, sub)

    # Hidden tile: largest multiple of 128 <= target that divides H_p (no H round-up).
    th_eff = _pick_th(H_p, th_target)

    # Shrink tiles until the (double-buffered) working set fits the VMEM budget.
    budget = int(vmem_limit * 0.85)
    while _vmem_estimate(tm_eff, th_eff, C_p, O_p, in_bytes, out_bytes) > budget:
        if th_eff > 512:
            th_eff = _pick_th(H_p, th_eff - 128)
        elif tm_eff > 256:
            tm_eff = max(sub, _round_up(tm_eff // 2, sub))
        elif th_eff > 128:
            th_eff = _pick_th(H_p, th_eff - 128)
        elif tm_eff > sub:
            tm_eff = max(sub, _round_up(tm_eff // 2, sub))
        else:
            break

    M_p = _round_up(M, tm_eff)
    n_row_tiles = M_p // tm_eff
    n_h_tiles = H_p // th_eff

    x2d = _pad2d(x.reshape(M, C).astype(in_dtype), M_p, C_p)
    w1p = _pad2d(w1.astype(in_dtype), C_p, H_p)
    b1p = _pad2d(b1.reshape(1, -1).astype(in_dtype), 1, H_p)
    w2p = _pad2d(w2.astype(in_dtype), H_p, O_p)
    b2p = _pad2d(b2.reshape(1, -1).astype(in_dtype), 1, O_p)

    weight_bytes = (w1p.size + b1p.size + w2p.size + b2p.size) * in_bytes
    cost = pl.CostEstimate(
        flops=2 * M_p * H_p * (C_p + O_p),
        transcendentals=M_p * H_p,
        # x tile is constant along the h axis (read once); weights re-stream per row tile.
        bytes_accessed=int(x2d.size * in_bytes
                           + n_row_tiles * weight_bytes
                           + M_p * O_p * out_bytes),
    )

    out2d = pl.pallas_call(
        mlp_kernel,
        out_shape=jax.ShapeDtypeStruct((M_p, O_p), out_dtype),
        grid_spec=pltpu.PrefetchScalarGridSpec(
            num_scalar_prefetch=0,
            grid=(n_row_tiles, n_h_tiles),
            in_specs=[
                pl.BlockSpec((tm_eff, C_p), lambda i, h: (i, 0)),   # x rows (const over h)
                pl.BlockSpec((C_p, th_eff), lambda i, h: (0, h)),   # fc1 weight H-slice
                pl.BlockSpec((1, th_eff), lambda i, h: (0, h)),     # fc1 bias H-slice
                pl.BlockSpec((th_eff, O_p), lambda i, h: (h, 0)),   # fc2 weight H-slice
                pl.BlockSpec((1, O_p), lambda i, h: (0, 0)),        # fc2 bias (constant)
            ],
            out_specs=pl.BlockSpec((tm_eff, O_p), lambda i, h: (i, 0)),
            scratch_shapes=[pltpu.VMEM((tm_eff, O_p), jnp.float32)],
        ),
        compiler_params=pltpu.CompilerParams(
            dimension_semantics=("parallel", "arbitrary"),
            vmem_limit_bytes=int(vmem_limit),
        ),
        cost_estimate=cost,
    )(x2d, w1p, b1p, w2p, b2p)

    return out2d[:M, :O].reshape(B, S, O)


def mlp_reference(x, w1, b1, w2, b2):
    h = jnp.einsum("bsc,ch->bsh", x, w1) + b1.reshape(1, 1, -1)
    h = _gelu_exact(h)
    y = jnp.einsum("bsh,ho->bso", h, w2) + b2.reshape(1, 1, -1)
    return y


if __name__ == "__main__":
    # Small transformer-like shapes: batch=2, seq=8, in_channels=32, hidden=64, out=32.
    B, S, C, H, O = 2, 8, 32, 64, 32

    key = jax.random.PRNGKey(0)
    kx, k1, k2, k3, k4 = jax.random.split(key, 5)

    x = jax.random.normal(kx, (B, S, C), dtype=jnp.float32)
    # Params stored [in, out] (transpose of PyTorch's [out, in]) so the kernel does x @ W.
    w1 = jax.random.normal(k1, (C, H), dtype=jnp.float32) * 0.02
    b1 = jax.random.normal(k2, (1, H), dtype=jnp.float32) * 0.02
    w2 = jax.random.normal(k3, (H, O), dtype=jnp.float32) * 0.02
    b2 = jax.random.normal(k4, (1, O), dtype=jnp.float32) * 0.02

    ref = mlp_reference(x, w1, b1, w2, b2)

    # Exact (f32) path: matches PyTorch's fc1 -> exact GELU -> fc2 closely.
    out = mlp_block(x, w1, b1, w2, b2)
    out = jax.block_until_ready(out)
    assert out.shape == (B, S, O)
    assert jnp.allclose(out, ref, atol=1e-4, rtol=1e-4), "f32 mismatch vs reference"

    # Mixed-precision path (bf16 operands on the MXU, f32 accumulation): looser tolerance.
    out_bf16 = mlp_block(x, w1, b1, w2, b2, compute_dtype=jnp.bfloat16)
    out_bf16 = jax.block_until_ready(out_bf16)
    assert out_bf16.shape == (B, S, O)
    assert jnp.allclose(out_bf16, ref, atol=5e-2, rtol=5e-2), "bf16 mismatch vs reference"

    print("KERNEL_OK")
</pallas_src>

<mosaic_0001>
module attributes {stable_mosaic.version = 11 : i64} {
  func.func @mlp_kernel(%arg0: i32, %arg1: i32, %arg2: memref<16x128xf32, #tpu.memory_space<vmem>>, %arg3: memref<128x128xf32, #tpu.memory_space<vmem>>, %arg4: memref<1x128xf32, #tpu.memory_space<vmem>>, %arg5: memref<128x128xf32, #tpu.memory_space<vmem>>, %arg6: memref<1x128xf32, #tpu.memory_space<vmem>>, %arg7: memref<16x128xf32, #tpu.memory_space<vmem>>, %arg8: memref<16x128xf32, #tpu.memory_space<vmem>>) attributes {dimension_semantics = [#tpu.dimension_semantics<parallel>, #tpu.dimension_semantics<arbitrary>], iteration_bounds = array<i64: 1, 1>, scalar_prefetch = 0 : i64, scratch_operands = 1 : i64, tpu.core_type = #tpu.core_type<tc>, window_params = [{transform_indices = @transform_0, window_bounds = array<i64: 16, 128>}, {transform_indices = @transform_1, window_bounds = array<i64: 128, 128>}, {transform_indices = @transform_2, window_bounds = array<i64: 1, 128>}, {transform_indices = @transform_3, window_bounds = array<i64: 128, 128>}, {pipeline_mode = #tpu.pipeline_mode<synchronous>, transform_indices = @transform_4, window_bounds = array<i64: 1, 128>}, {transform_indices = @transform_5, window_bounds = array<i64: 16, 128>}]} {
    %c0 = arith.constant 0 : index
    %c0_0 = arith.constant 0 : index
    %0 = vector.load %arg2[%c0, %c0_0] : memref<16x128xf32, #tpu.memory_space<vmem>>, vector<16x128xf32>
    %c0_1 = arith.constant 0 : index
    %c0_2 = arith.constant 0 : index
    %1 = vector.load %arg3[%c0_1, %c0_2] : memref<128x128xf32, #tpu.memory_space<vmem>>, vector<128x128xf32>
    %cst = arith.constant dense<0.000000e+00> : vector<16x128xf32>
    %2 = tpu.matmul %0, %1, %cst {dimension_numbers = #tpu.dot_dimension_numbers<[1], [0], [0], [1], [0, 0, 1, 1], [], []>} : vector<16x128xf32>, vector<128x128xf32>, vector<16x128xf32> -> vector<16x128xf32>
    %c0_3 = arith.constant 0 : index
    %c0_4 = arith.constant 0 : index
    %3 = vector.load %arg4[%c0_3, %c0_4] : memref<1x128xf32, #tpu.memory_space<vmem>>, vector<1x128xf32>
    %4 = vector.broadcast %3 : vector<1x128xf32> to vector<16x128xf32>
    %5 = arith.addf %2, %4 : vector<16x128xf32>
    %cst_5 = arith.constant 5.000000e-01 : f32
    %6 = vector.broadcast %cst_5 : f32 to vector<16x128xf32>
    %7 = arith.mulf %6, %5 : vector<16x128xf32>
    %cst_6 = arith.constant 0.707106769 : f32
    %8 = vector.broadcast %cst_6 : f32 to vector<16x128xf32>
    %9 = arith.mulf %5, %8 : vector<16x128xf32>
    %10 = math.erf %9 : vector<16x128xf32>
    %cst_7 = arith.constant 1.000000e+00 : f32
    %11 = vector.broadcast %cst_7 : f32 to vector<16x128xf32>
    %12 = arith.addf %11, %10 : vector<16x128xf32>
    %13 = arith.mulf %7, %12 : vector<16x128xf32>
    %c0_8 = arith.constant 0 : index
    %c0_9 = arith.constant 0 : index
    %14 = vector.load %arg5[%c0_8, %c0_9] : memref<128x128xf32, #tpu.memory_space<vmem>>, vector<128x128xf32>
    %cst_10 = arith.constant dense<0.000000e+00> : vector<16x128xf32>
    %15 = tpu.matmul %13, %14, %cst_10 {dimension_numbers = #tpu.dot_dimension_numbers<[1], [0], [0], [1], [0, 0, 1, 1], [], []>} : vector<16x128xf32>, vector<128x128xf32>, vector<16x128xf32> -> vector<16x128xf32>
    %c0_i32 = arith.constant 0 : i32
    %16 = arith.cmpi eq, %arg1, %c0_i32 : i32
    %17 = arith.extui %16 : i1 to i32
    %c0_i32_11 = arith.constant 0 : i32
    %18 = arith.cmpi ne, %17, %c0_i32_11 : i32
    scf.if %18 {
      %c0_16 = arith.constant 0 : index
      %c0_17 = arith.constant 0 : index
      %25 = vector.load %arg8[%c0_16, %c0_17] : memref<16x128xf32, #tpu.memory_space<vmem>>, vector<16x128xf32>
      tpu.vector_store %arg8[%c0_16, %c0_17], %15 {strides = array<i32>} : memref<16x128xf32, #tpu.memory_space<vmem>>, vector<16x128xf32>,
    } else {
    }
    %c0_i32_12 = arith.constant 0 : i32
    %19 = arith.cmpi ne, %arg1, %c0_i32_12 : i32
    %20 = arith.extui %19 : i1 to i32
    %c0_i32_13 = arith.constant 0 : i32
    %21 = arith.cmpi ne, %20, %c0_i32_13 : i32
    scf.if %21 {
      %c0_16 = arith.constant 0 : index
      %c0_17 = arith.constant 0 : index
      %25 = vector.load %arg8[%c0_16, %c0_17] : memref<16x128xf32, #tpu.memory_space<vmem>>, vector<16x128xf32>
      %26 = arith.addf %25, %15 : vector<16x128xf32>
      %c0_18 = arith.constant 0 : index
      %c0_19 = arith.constant 0 : index
      %27 = vector.load %arg8[%c0_18, %c0_19] : memref<16x128xf32, #tpu.memory_space<vmem>>, vector<16x128xf32>
      tpu.vector_store %arg8[%c0_18, %c0_19], %26 {strides = array<i32>} : memref<16x128xf32, #tpu.memory_space<vmem>>, vector<16x128xf32>,
    } else {
    }
    %c0_i32_14 = arith.constant 0 : i32
    %22 = arith.cmpi eq, %arg1, %c0_i32_14 : i32
    %23 = arith.extui %22 : i1 to i32
    %c0_i32_15 = arith.constant 0 : i32
    %24 = arith.cmpi ne, %23, %c0_i32_15 : i32
    scf.if %24 {
      %c0_16 = arith.constant 0 : index
      %c0_17 = arith.constant 0 : index
      %25 = vector.load %arg8[%c0_16, %c0_17] : memref<16x128xf32, #tpu.memory_space<vmem>>, vector<16x128xf32>
      %c0_18 = arith.constant 0 : index
      %c0_19 = arith.constant 0 : index
      %26 = vector.load %arg6[%c0_18, %c0_19] : memref<1x128xf32, #tpu.memory_space<vmem>>, vector<1x128xf32>
      %27 = vector.broadcast %26 : vector<1x128xf32> to vector<16x128xf32>
      %28 = arith.addf %25, %27 : vector<16x128xf32>
      %c0_20 = arith.constant 0 : index
      %c0_21 = arith.constant 0 : index
      %29 = vector.load %arg7[%c0_20, %c0_21] : memref<16x128xf32, #tpu.memory_space<vmem>>, vector<16x128xf32>
      tpu.vector_store %arg7[%c0_20, %c0_21], %28 {strides = array<i32>} : memref<16x128xf32, #tpu.memory_space<vmem>>, vector<16x128xf32>,
    } else {
    }
    return
  }
  func.func @transform_0(%arg0: i32, %arg1: i32) -> (i32, i32) {
    %c0_i32 = arith.constant 0 : i32
    %c0_i32_0 = arith.constant 0 : i32
    return %arg0, %c0_i32 : i32, i32
  }
  func.func @transform_1(%arg0: i32, %arg1: i32) -> (i32, i32) {
    %c0_i32 = arith.constant 0 : i32
    %c0_i32_0 = arith.constant 0 : i32
    return %c0_i32, %arg1 : i32, i32
  }
  func.func @transform_2(%arg0: i32, %arg1: i32) -> (i32, i32) {
    %c0_i32 = arith.constant 0 : i32
    %c0_i32_0 = arith.constant 0 : i32
    return %c0_i32, %arg1 : i32, i32
  }
  func.func @transform_3(%arg0: i32, %arg1: i32) -> (i32, i32) {
    %c0_i32 = arith.constant 0 : i32
    %c0_i32_0 = arith.constant 0 : i32
    return %arg1, %c0_i32 : i32, i32
  }
  func.func @transform_4(%arg0: i32, %arg1: i32) -> (i32, i32) {
    %c0_i32 = arith.constant 0 : i32
    %c0_i32_0 = arith.constant 0 : i32
    %c0_i32_1 = arith.constant 0 : i32
    return %c0_i32, %c0_i32_0 : i32, i32
  }
  func.func @transform_5(%arg0: i32, %arg1: i32) -> (i32, i32) {
    %c0_i32 = arith.constant 0 : i32
    %c0_i32_0 = arith.constant 0 : i32
    return %arg0, %c0_i32 : i32, i32
  }
}

</mosaic_0001>

<llo_original>
// kernel: mlp_block.1
$region0: #{mlp_block.1}
  #allocation0 [shape = 'u32[]', space=smem, size = 0x4, offset = 0x4, fixed_abs, tag = 'smem constant byte address 0x4 - core index']
  #allocation1 [shape = 'u32[144,128]{1,0:T(1,128)}', space=vmem, size = 0x12000, scoped, tag = 'internal scratch']
  #allocation2 [shape = 'f32[16,128]{1,0:T(8,128)}', space=vmem, size = 0x2000, scoped, tag = 'scratch operand']
  %s0 = inlined_call_operand.vmem [shape: f32[16,128], index: 0, kind: input, shape index: {}]
  %s1 = inlined_call_operand.vmem [shape: f32[128,128], index: 1, kind: input, shape index: {}]
  %s2 = inlined_call_operand.vmem [shape: f32[1,128], index: 2, kind: input, shape index: {}]
  %s3 = inlined_call_operand.vmem [shape: f32[128,128], index: 3, kind: input, shape index: {}]
  %s4 = inlined_call_operand.vmem [shape: f32[1,128], index: 4, kind: input, shape index: {}]
  %s5 = inlined_call_operand.vmem [shape: f32[16,128], index: 5, kind: output, shape index: {}]
  %s6 = sld [smem:[#allocation0]]
  $region42: #{mlp_block.1} parent=0
    _
  %s8 = ssub.s32 1, %s6
  %s9 = scalar_select 0, %s8, %s6
  // Predicated region
  $region2: #{mlp_block.1} parent=0 // pred_check
    _
  $region3: #{mlp_block.1} parent=0 // pred_check_branch
    %11 = sbr.rel (0) target = $region5
  $region4: #{mlp_block.1} parent=0 // pred_region
    _
  $region5: #{mlp_block.1} parent=0 // pred_fallthru
    _
  // Predicated region
  $region6: #{mlp_block.1} parent=0 // pred_check
    _
  $region7: #{mlp_block.1} parent=0 // pred_check_branch
    %13 = sbr.rel (0) target = $region9
  $region8: #{mlp_block.1} parent=0 // pred_region
    _
  $region9: #{mlp_block.1} parent=0 // pred_fallthru
    _
  // Predicated region
  $region10: #{mlp_block.1} parent=0 // pred_check
    _
  $region11: #{mlp_block.1} parent=0 // pred_check_branch
    %15 = sbr.rel (0) target = $region13
  $region12: #{mlp_block.1} parent=0 // pred_region
    _
  $region13: #{mlp_block.1} parent=0 // pred_fallthru
    _
  // Predicated region
  $region14: #{mlp_block.1} parent=0 // pred_check
    _
  $region15: #{mlp_block.1} parent=0 // pred_check_branch
    %17 = sbr.rel (0) target = $region17
  $region16: #{mlp_block.1} parent=0 // pred_region
    _
  $region17: #{mlp_block.1} parent=0 // pred_fallthru
    _
  // Predicated region
  $region18: #{mlp_block.1} parent=0 // pred_check
    _
  $region19: #{mlp_block.1} parent=0 // pred_check_branch
    %19 = sbr.rel (0) target = $region21
  $region20: #{mlp_block.1} parent=0 // pred_region
    _
  $region21: #{mlp_block.1} parent=0 // pred_fallthru
    _
  %v20 = vld [vmem:[%s0] sm:$0xff]
  %v21 = vld [vmem:[%s0 + $0x8] sm:$0xff]
  %v22 = vld [vmem:[%s1] sm:$0xff]
  %v23 = vld [vmem:[%s1 + $0x8] sm:$0xff]
  %v24 = vld [vmem:[%s1 + $0x10] sm:$0xff]
  %v25 = vld [vmem:[%s1 + $0x18] sm:$0xff]
  %v26 = vld [vmem:[%s1 + $0x20] sm:$0xff]
  %v27 = vld [vmem:[%s1 + $0x28] sm:$0xff]
  %v28 = vld [vmem:[%s1 + $0x30] sm:$0xff]
  %v29 = vld [vmem:[%s1 + $0x38] sm:$0xff]
  %v30 = vld [vmem:[%s1 + $0x40] sm:$0xff]
  %v31 = vld [vmem:[%s1 + $0x48] sm:$0xff]
  %v32 = vld [vmem:[%s1 + $0x50] sm:$0xff]
  %v33 = vld [vmem:[%s1 + $0x58] sm:$0xff]
  %v34 = vld [vmem:[%s1 + $0x60] sm:$0xff]
  %v35 = vld [vmem:[%s1 + $0x68] sm:$0xff]
  %v36 = vld [vmem:[%s1 + $0x70] sm:$0xff]
  %v37 = vld [vmem:[%s1 + $0x78] sm:$0xff]
  %v38 = vld [vmem:[%s2] sm:$0x1]
  %v40 = vlaneseq
  %v41 = vshrl.u32 %v40, 7
  %v42 = vsub.s32 0, %v41
  %v43 = vrot.slane %v38, %v42
  %45 = vmatprep.subr.mxu0 0.0
  %46 = vmatpush1.msra.mxu0 %v22
  %47 = vmatprep.subr.mxu0 0.0
  %48 = vmatpush1.msra.mxu0 %v23
  %49 = vmatprep.subr.mxu0 0.0
  %50 = vmatpush1.msra.mxu0 %v24
  %51 = vmatprep.subr.mxu0 0.0
  %52 = vmatpush1.msra.mxu0 %v25
  %53 = vmatprep.subr.mxu0 0.0
  %54 = vmatpush1.msra.mxu0 %v26
  %55 = vmatprep.subr.mxu0 0.0
  %56 = vmatpush1.msra.mxu0 %v27
  %57 = vmatprep.subr.mxu0 0.0
  %58 = vmatpush1.msra.mxu0 %v28
  %59 = vmatprep.subr.mxu0 0.0
  %60 = vmatpush1.msra.mxu0 %v29
  %61 = vmatprep.subr.mxu0 0.0
  %62 = vmatpush1.msra.mxu0 %v30
  %63 = vmatprep.subr.mxu0 0.0
  %64 = vmatpush1.msra.mxu0 %v31
  %65 = vmatprep.subr.mxu0 0.0
  %66 = vmatpush1.msra.mxu0 %v32
  %67 = vmatprep.subr.mxu0 0.0
  %68 = vmatpush1.msra.mxu0 %v33
  %69 = vmatprep.subr.mxu0 0.0
  %70 = vmatpush1.msra.mxu0 %v34
  %71 = vmatprep.subr.mxu0 0.0
  %72 = vmatpush1.msra.mxu0 %v35
  %73 = vmatprep.subr.mxu0 0.0
  %74 = vmatpush1.msra.mxu0 %v36
  %75 = vmatprep.subr.mxu0 0.0
  %76 = vmatpush1.msra.mxu0 %v37
  %77 = vmatprep.subr.mxu0 0.0
  %78 = vmatpush1.msra.mxu0 0.0
  %79 = vmatprep.subr.mxu0 0.0
  %80 = vmatpush1.msra.mxu0 0.0
  %81 = vmatprep.subr.mxu0 0.0
  %82 = vmatpush1.msra.mxu0 0.0
  %83 = vmatprep.subr.mxu0 0.0
  %84 = vmatpush1.msra.mxu0 0.0
  %85 = vmatprep.subr.mxu0 0.0
  %86 = vmatpush1.msra.mxu0 0.0
  %87 = vmatprep.subr.mxu0 0.0
  %88 = vmatpush1.msra.mxu0 0.0
  %89 = vmatprep.subr.mxu0 0.0
  %90 = vmatpush1.msra.mxu0 0.0
  %91 = vmatprep.subr.mxu0 0.0
  %92 = vmatpush1.msra.mxu0 0.0
  %93 = vmatprep.subr.mxu0 0.0
  %94 = vmatpush1.msra.mxu0 0.0
  %95 = vmatprep.subr.mxu0 0.0
  %96 = vmatpush1.msra.mxu0 0.0
  %97 = vmatprep.subr.mxu0 0.0
  %98 = vmatpush1.msra.mxu0 0.0
  %99 = vmatprep.subr.mxu0 0.0
  %100 = vmatpush1.msra.mxu0 0.0
  %101 = vmatprep.subr.mxu0 0.0
  %102 = vmatpush1.msra.mxu0 0.0
  %103 = vmatprep.subr.mxu0 0.0
  %104 = vmatpush1.msra.mxu0 0.0
  %105 = vmatprep.subr.mxu0 0.0
  %106 = vmatpush1.msra.mxu0 0.0
  %107 = vmatprep.subr.mxu0 0.0
  %108 = vmatpush1.msra.mxu0 0.0
  %109 = vmatprep.mubr.f32.mxu0 0.0
  %110 = vmatmul.mubr.f32.gmra.mrb[0].mxu0 %v20
  %v111 = vpop.f32.mrb[0].mxu0
  %v112 = vadd.f32 %v43, %v111
  %v113 = vpop.f32.mrb[0].mxu0
  %114 = vmatprep.mubr.f32.mxu0 0.0
  %115 = vmatmul.mubr.f32.gmra.mrb[0].mxu0 %v21
  %v116 = vpop.f32.mrb[0].mxu0
  %v117 = vadd.f32 %v43, %v116
  %v118 = vpop.f32.mrb[0].mxu0
  %119 = vdwg.mxu0
  %v120 = vmul.f32 %v112, 0.5
  %v121 = vmul.f32 %v117, 0.5
  %v122 = vmul.f32 %v112, 0.70710677
  %v123 = vmul.f32 %v117, 0.70710677
  %v124 = verf.f32.pop %v122
  %v125 = verf.f32.pop %v123
  %v126 = vadd.f32 %v124, 1.0
  %v127 = vadd.f32 %v125, 1.0
  %v128 = vmul.f32 %v120, %v126
  %v129 = vmul.f32 %v121, %v127
  %v130 = vld [vmem:[%s3] sm:$0xff]
  %v131 = vld [vmem:[%s3 + $0x8] sm:$0xff]
  %v132 = vld [vmem:[%s3 + $0x10] sm:$0xff]
  %v133 = vld [vmem:[%s3 + $0x18] sm:$0xff]
  %v134 = vld [vmem:[%s3 + $0x20] sm:$0xff]
  %v135 = vld [vmem:[%s3 + $0x28] sm:$0xff]
  %v136 = vld [vmem:[%s3 + $0x30] sm:$0xff]
  %v137 = vld [vmem:[%s3 + $0x38] sm:$0xff]
  %v138 = vld [vmem:[%s3 + $0x40] sm:$0xff]
  %v139 = vld [vmem:[%s3 + $0x48] sm:$0xff]
  %v140 = vld [vmem:[%s3 + $0x50] sm:$0xff]
  %v141 = vld [vmem:[%s3 + $0x58] sm:$0xff]
  %v142 = vld [vmem:[%s3 + $0x60] sm:$0xff]
  %v143 = vld [vmem:[%s3 + $0x68] sm:$0xff]
  %v144 = vld [vmem:[%s3 + $0x70] sm:$0xff]
  %v145 = vld [vmem:[%s3 + $0x78] sm:$0xff]
  %146 = vmatprep.subr.mxu0 0.0
  %147 = vmatpush1.msra.mxu0 %v130
  %148 = vmatprep.subr.mxu0 0.0
  %149 = vmatpush1.msra.mxu0 %v131
  %150 = vmatprep.subr.mxu0 0.0
  %151 = vmatpush1.msra.mxu0 %v132
  %152 = vmatprep.subr.mxu0 0.0
  %153 = vmatpush1.msra.mxu0 %v133
  %154 = vmatprep.subr.mxu0 0.0
  %155 = vmatpush1.msra.mxu0 %v134
  %156 = vmatprep.subr.mxu0 0.0
  %157 = vmatpush1.msra.mxu0 %v135
  %158 = vmatprep.subr.mxu0 0.0
  %159 = vmatpush1.msra.mxu0 %v136
  %160 = vmatprep.subr.mxu0 0.0
  %161 = vmatpush1.msra.mxu0 %v137
  %162 = vmatprep.subr.mxu0 0.0
  %163 = vmatpush1.msra.mxu0 %v138
  %164 = vmatprep.subr.mxu0 0.0
  %165 = vmatpush1.msra.mxu0 %v139
  %166 = vmatprep.subr.mxu0 0.0
  %167 = vmatpush1.msra.mxu0 %v140
  %168 = vmatprep.subr.mxu0 0.0
  %169 = vmatpush1.msra.mxu0 %v141
  %170 = vmatprep.subr.mxu0 0.0
  %171 = vmatpush1.msra.mxu0 %v142
  %172 = vmatprep.subr.mxu0 0.0
  %173 = vmatpush1.msra.mxu0 %v143
  %174 = vmatprep.subr.mxu0 0.0
  %175 = vmatpush1.msra.mxu0 %v144
  %176 = vmatprep.subr.mxu0 0.0
  %177 = vmatpush1.msra.mxu0 %v145
  %178 = vmatprep.subr.mxu0 0.0
  %179 = vmatpush1.msra.mxu0 0.0
  %180 = vmatprep.subr.mxu0 0.0
  %181 = vmatpush1.msra.mxu0 0.0
  %182 = vmatprep.subr.mxu0 0.0
  %183 = vmatpush1.msra.mxu0 0.0
  %184 = vmatprep.subr.mxu0 0.0
  %185 = vmatpush1.msra.mxu0 0.0
  %186 = vmatprep.subr.mxu0 0.0
  %187 = vmatpush1.msra.mxu0 0.0
  %188 = vmatprep.subr.mxu0 0.0
  %189 = vmatpush1.msra.mxu0 0.0
  %190 = vmatprep.subr.mxu0 0.0
  %191 = vmatpush1.msra.mxu0 0.0
  %192 = vmatprep.subr.mxu0 0.0
  %193 = vmatpush1.msra.mxu0 0.0
  %194 = vmatprep.subr.mxu0 0.0
  %195 = vmatpush1.msra.mxu0 0.0
  %196 = vmatprep.subr.mxu0 0.0
  %197 = vmatpush1.msra.mxu0 0.0
  %198 = vmatprep.subr.mxu0 0.0
  %199 = vmatpush1.msra.mxu0 0.0
  %200 = vmatprep.subr.mxu0 0.0
  %201 = vmatpush1.msra.mxu0 0.0
  %202 = vmatprep.subr.mxu0 0.0
  %203 = vmatpush1.msra.mxu0 0.0
  %204 = vmatprep.subr.mxu0 0.0
  %205 = vmatpush1.msra.mxu0 0.0
  %206 = vmatprep.subr.mxu0 0.0
  %207 = vmatpush1.msra.mxu0 0.0
  %208 = vmatprep.subr.mxu0 0.0
  %209 = vmatpush1.msra.mxu0 0.0
  %210 = vmatprep.mubr.f32.mxu0 0.0
  %211 = vmatmul.mubr.f32.gmra.mrb[0].mxu0 %v128
  %v212 = vpop.f32.mrb[0].mxu0
  %v213 = vadd.f32 0.0, %v212
  %v214 = vpop.f32.mrb[0].mxu0
  %215 = vmatprep.mubr.f32.mxu0 0.0
  %216 = vmatmul.mubr.f32.gmra.mrb[0].mxu0 %v129
  %v217 = vpop.f32.mrb[0].mxu0
  %v218 = vadd.f32 0.0, %v217
  %v219 = vpop.f32.mrb[0].mxu0
  %220 = vdwg.mxu0
  %p221 = scmp.eq.s32.totalorder 0, 0
  // Predicated region
  $region22: #{mlp_block.1} parent=0 // pred_check
    %p222 = pneg %p221
  $region23: #{mlp_block.1} parent=0 // pred_check_branch
    %224 = sbr.rel (%p222) target = $region25
  $region24: #{mlp_block.1} parent=0 // pred_region
    %225 = vst [vmem:[#allocation2] sm:$0xff] %v213
    %226 = vst [vmem:[#allocation2 + $0x8] sm:$0xff] %v218
  $region25: #{mlp_block.1} parent=0 // pred_fallthru
    _
  %p227 = scmp.ne.s32.totalorder 0, 0
  // Predicated region
  $region26: #{mlp_block.1} parent=0 // pred_check
    %p228 = pneg %p227
  $region27: #{mlp_block.1} parent=0 // pred_check_branch
    %230 = sbr.rel (%p228) target = $region29
  $region28: #{mlp_block.1} parent=0 // pred_region
    %v231 = vld [vmem:[#allocation2] sm:$0xff]
    %v232 = vld [vmem:[#allocation2 + $0x8] sm:$0xff]
    %v233 = vadd.f32 %v231, %v213
    %v234 = vadd.f32 %v232, %v218
    %235 = vst [vmem:[#allocation2] sm:$0xff] %v233
    %236 = vst [vmem:[#allocation2 + $0x8] sm:$0xff] %v234
  $region29: #{mlp_block.1} parent=0 // pred_fallthru
    _
  // Predicated region
  $region30: #{mlp_block.1} parent=0 // pred_check
    %p237 = pneg %p221
  $region31: #{mlp_block.1} parent=0 // pred_check_branch
    %239 = sbr.rel (%p237) target = $region33
  $region32: #{mlp_block.1} parent=0 // pred_region
    %v240 = vld [vmem:[#allocation2] sm:$0xff]
    %v241 = vld [vmem:[#allocation2 + $0x8] sm:$0xff]
    %v242 = vld [vmem:[%s4] sm:$0x1]
    %v244 = vlaneseq
    %v245 = vshrl.u32 %v244, 7
    %v246 = vsub.s32 0, %v245
    %v247 = vrot.slane %v242, %v246
    %v249 = vadd.f32 %v240, %v247
    %v250 = vadd.f32 %v241, %v247
    %251 = vst [vmem:[%s5] sm:$0xff] %v249
    %252 = vst [vmem:[%s5 + $0x8] sm:$0xff] %v250
  $region33: #{mlp_block.1} parent=0 // pred_fallthru
    _
  // Predicated region
  $region34: #{mlp_block.1} parent=0 // pred_check
    _
  $region35: #{mlp_block.1} parent=0 // pred_check_branch
    %254 = sbr.rel (0) target = $region37
  $region36: #{mlp_block.1} parent=0 // pred_region
    _
  $region37: #{mlp_block.1} parent=0 // pred_fallthru
    _
  // Predicated region
  $region38: #{mlp_block.1} parent=0 // pred_check
    _
  $region39: #{mlp_block.1} parent=0 // pred_check_branch
    %256 = sbr.rel (0) target = $region41
  $region40: #{mlp_block.1} parent=0 // pred_region
    _
  $region41: #{mlp_block.1} parent=0 // pred_fallthru
    _

</llo_original>
